<compile_context>
chip_gen: v7x
topology: tpu7x:2x2x1
jax: 0.10.0
libtpu: 0.0.40
codegen_flags: <defaults>
</compile_context>

<pallas_src>
import jax
import jax.numpy as jnp
import numpy as np
from jax import lax
from jax.experimental import pallas as pl
from jax.experimental.pallas import tpu as pltpu


def _round_up(x, m):
    return ((x + m - 1) // m) * m


def _pick_tile_h(Hp, Wp, max_lanes):
    """Largest TILE_H that divides Hp, is a multiple of 8 (so TILE_H*Wp % 128 == 0 given
    Wp % 16 == 0) and keeps the per-step block <= max_lanes lanes.  Falls back to 8."""
    best = 8
    for th in range(8, Hp + 1, 8):
        if Hp % th == 0 and th * Wp <= max_lanes:
            best = th
    return best


# ----------------------------------------------------------------------------- #
# Pallas kernel: 3x3 conv (stride 1, padding 1) on a lane-flattened image.
# Per grid step (b, t): stage one row strip + halo rows into a VMEM window whose ends are
# zeroed at the image top/bottom (this IS the conv zero padding), then accumulate the 9 taps
# as static lane-shifted slices of that window via K=Cin dots.  Left/right image-border taps
# are killed with column masks (periodic in the lane index, independent of t).
# ----------------------------------------------------------------------------- #
def _make_conv3x3_kernel(Cin, Cout, Wp, S, Hw):
    def kernel(x_ref, w_ref, o_ref, xw_ref):
        # x_ref : (1, Cin, N)         whole padded image, spatial flattened on lanes
        #                             (block index constant over t -> DMA'd once per b)
        # w_ref : (9, Cout, Cin)      conv taps, k = ky*3 + kx
        # o_ref : (1, Cout, S)        lane-dense output row strip
        # xw_ref: (Cin, Hw + S + Hw)  strip + halo staging window (zero halo at image edges)
        t = pl.program_id(1)
        n_t = pl.num_programs(1)

        # --- stage strip + halos (folds the conv's zero padding; no wrapper pad pass) ---
        strip_start = pl.multiple_of(t * S, 128)
        xw_ref[:, Hw:Hw + S] = x_ref[0, :, pl.ds(strip_start, S)]

        @pl.when(t == 0)
        def _():
            xw_ref[:, :Hw] = jnp.zeros((Cin, Hw), xw_ref.dtype)

        @pl.when(t > 0)
        def _():
            left = pl.multiple_of(t * S - Hw, 128)
            xw_ref[:, :Hw] = x_ref[0, :, pl.ds(left, Hw)]

        @pl.when(t == n_t - 1)
        def _():
            xw_ref[:, Hw + S:] = jnp.zeros((Cin, Hw), xw_ref.dtype)

        @pl.when(t < n_t - 1)
        def _():
            right = pl.multiple_of((t + 1) * S, 128)
            xw_ref[:, Hw + S:] = x_ref[0, :, pl.ds(right, Hw)]

        # --- left/right image-border masks (rows are handled by the zero halo) ---
        # column index is periodic in the lane position because S % Wp == 0.
        col = lax.broadcasted_iota(jnp.int32, (1, S), 1) % Wp
        ok_l = col > 0            # x-1 >= 0
        ok_r = col < (Wp - 1)     # x+1 <  Wp

        # --- 9 accumulating K=Cin dots; tap RHS = static lane-shifted slice of the window ---
        acc = jnp.zeros((Cout, S), jnp.float32)
        for kx, dx in enumerate((-1, 0, 1)):
            part = jnp.zeros((Cout, S), jnp.float32)
            for ky, dy in enumerate((-1, 0, 1)):
                off = dy * Wp + dx
                tap = xw_ref[:, Hw + off:Hw + off + S]            # (Cin, S)
                part = part + jnp.dot(w_ref[ky * 3 + kx], tap,
                                      preferred_element_type=jnp.float32)
            if dx == -1:
                part = jnp.where(ok_l, part, 0.0)
            elif dx == 1:
                part = jnp.where(ok_r, part, 0.0)
            acc = acc + part

        o_ref[0] = acc.astype(o_ref.dtype)

    return kernel


def conv3x3_pallas(x_flat, w9, Hp, Wp, *, out_dtype, max_lanes_per_step=8192):
    """x_flat: (B, Cin, Hp*Wp) lane-flattened padded image (no zero halo).
       w9:     (9, Cout, Cin) conv taps, k = ky*3 + kx.
       Returns (B, Cout, Hp*Wp)."""
    B, Cin, N = x_flat.shape
    _, Cout, _ = w9.shape
    assert N == Hp * Wp and Hp % 16 == 0 and Wp % 16 == 0

    TILE_H = _pick_tile_h(Hp, Wp, max_lanes_per_step)
    S = TILE_H * Wp
    # Halo >= Wp+1 keeps every static tap slice in-bounds; multiple of 128 keeps the halo
    # loads lane-aligned (S is a multiple of 128 as well).
    Hw = _round_up(Wp + 1, 128)
    assert S % 128 == 0 and S >= Hw
    n_tiles = Hp // TILE_H

    # Deliberate VMEM budget: double-buffered whole-image input block + double-buffered
    # output strip + staging scratch + headroom for in-kernel temporaries.
    in_item = jnp.dtype(x_flat.dtype).itemsize
    need = (2 * Cin * N * in_item
            + 2 * Cout * S * jnp.dtype(out_dtype).itemsize
            + 8 * (S + 2 * Hw) * in_item
            + (4 << 20))
    vmem_limit = int(min(max(need, 32 << 20), 100 << 20))
    # TODO(synk): for frames where the whole Cin*Hp*Wp image block no longer fits VMEM
    # (roughly > 700x700 f32 on v7x's 64 MiB), switch the input to memory_space=pl.ANY with
    # per-strip manual make_async_copy instead of the whole-image BlockSpec.

    kernel = _make_conv3x3_kernel(Cin, Cout, Wp, S, Hw)
    return pl.pallas_call(
        kernel,
        out_shape=jax.ShapeDtypeStruct((B, Cout, N), out_dtype),
        grid=(B, n_tiles),
        in_specs=[
            # whole flattened image per batch element; block index constant across row strips
            pl.BlockSpec((1, Cin, N), lambda b, t: (b, 0, 0)),
            pl.BlockSpec((9, Cout, Cin), lambda b, t: (0, 0, 0)),
        ],
        out_specs=pl.BlockSpec((1, Cout, S), lambda b, t: (b, 0, t)),
        scratch_shapes=[pltpu.VMEM((Cin, Hw + S + Hw), x_flat.dtype)],
        compiler_params=pltpu.CompilerParams(
            dimension_semantics=("parallel", "parallel"),
            vmem_limit_bytes=vmem_limit),
    )(x_flat, w9)


# ----------------------------------------------------------------------------- #
# ProximalMapping forward (glue in plain JAX, conv in Pallas, no layout transposes)
# ----------------------------------------------------------------------------- #
def proximal_mapping_forward(r_nchw, w_embed_oihw, enc_fea=None, bot_fea=None, dec_fea=None,
                             compute_dtype=None, out_dtype=None, max_lanes_per_step=8192):
    """r_nchw: (B, dim+1, H, W); w_embed_oihw: (dim, dim+1, 3, 3) PyTorch OIHW layout.
       compute_dtype: optional operand dtype for the conv (bf16 is profitable on v5e, v6e and
       v7x -- the MXU takes bf16 on all three; accumulation stays f32).
       out_dtype: optional output dtype (bf16 halves the writeback stream if the downstream
       UM denoiser tolerates it); defaults to r's dtype."""
    b, c, h_inp, w_inp = r_nchw.shape
    hb, wb = 16, 16
    pad_h = (hb - h_inp % hb) % hb
    pad_w = (wb - w_inp % wb) % wb

    # reflect pad (right / bottom) == F.pad(..., [0, pad_w, 0, pad_h], mode='reflect')
    if pad_h or pad_w:
        r = jnp.pad(r_nchw, ((0, 0), (0, 0), (0, pad_h), (0, pad_w)), mode="reflect")
    else:
        r = r_nchw
    Hp, Wp = h_inp + pad_h, w_inp + pad_w

    Cout, Cin = w_embed_oihw.shape[0], w_embed_oihw.shape[1]
    # OIHW -> (9, Cout, Cin) with tap index k = ky*3 + kx, matching the in-kernel (dy, dx) loop
    w9 = jnp.transpose(w_embed_oihw, (2, 3, 0, 1)).reshape(9, Cout, Cin)

    # free reshape (contiguous): spatial flattened onto the lane axis; NO zero-halo pad pass
    x_flat = r.reshape(b, Cin, Hp * Wp)
    if compute_dtype is not None:
        x_flat = x_flat.astype(compute_dtype)
        w9 = w9.astype(compute_dtype)
    if out_dtype is None:
        out_dtype = r_nchw.dtype

    y_flat = conv3x3_pallas(x_flat, w9, Hp, Wp, out_dtype=out_dtype,
                            max_lanes_per_step=max_lanes_per_step)
    y = y_flat.reshape(b, Cout, Hp, Wp)   # free reshape, stays NCHW

    # TODO(synk): UM(dim) denoiser is not defined in the provided source; the embedding output
    # passes through in its place.  The crop below should be fused into the denoiser's first op
    # once UM is available (kept here to preserve the module's return semantics).
    xk = y[:, :, :h_inp, :w_inp]
    return xk, enc_fea, bot_fea, dec_fea


# ----------------------------------------------------------------------------- #
# Main
# ----------------------------------------------------------------------------- #
if __name__ == "__main__":
    dim = 4
    B, H, W = 2, 16, 16
    Cin = dim + 1  # the embedding conv expects dim+1 input channels

    key = jax.random.PRNGKey(0)
    k_x, k_w, k_x2, k_x3 = jax.random.split(key, 4)
    r = jax.random.normal(k_x, (B, Cin, H, W), dtype=jnp.float32)
    # deterministic Conv2d weight init (PyTorch OIHW shape): (dim, dim+1, 3, 3)
    fan_in = Cin * 3 * 3
    bound = 1.0 / np.sqrt(fan_in)
    w_embed = jax.random.uniform(k_w, (dim, Cin, 3, 3), jnp.float32, -bound, bound)

    def conv_ref(x, w):
        return lax.conv_general_dilated(x, w, window_strides=(1, 1),
                                        padding=((1, 1), (1, 1)),
                                        dimension_numbers=("NCHW", "OIHW", "NCHW"))

    # --- 1) 16x16: whole image per grid step, cross-check against XLA conv ---
    xk, enc_fea, bot_fea, dec_fea = proximal_mapping_forward(r, w_embed)
    xk = jax.block_until_ready(xk)
    ref = conv_ref(r, w_embed)[:, :, :H, :W]
    np.testing.assert_allclose(np.asarray(xk), np.asarray(ref), atol=1e-4, rtol=1e-4)
    assert xk.shape == (B, dim, H, W)

    # --- 2) non-multiple-of-16 shape: reflect pad + crop path ---
    B2, H2, W2 = 1, 20, 24
    r2 = jax.random.normal(k_x2, (B2, Cin, H2, W2), dtype=jnp.float32)
    xk2, *_ = proximal_mapping_forward(r2, w_embed)
    xk2 = jax.block_until_ready(xk2)
    pad_h2, pad_w2 = (16 - H2 % 16) % 16, (16 - W2 % 16) % 16
    r2p = jnp.pad(r2, ((0, 0), (0, 0), (0, pad_h2), (0, pad_w2)), mode="reflect")
    ref2 = conv_ref(r2p, w_embed)[:, :, :H2, :W2]
    np.testing.assert_allclose(np.asarray(xk2), np.asarray(ref2), atol=1e-4, rtol=1e-4)

    # --- 3) forced multi-row-strip path: exercises halo staging across strips ---
    B3, H3, W3 = 1, 64, 64
    r3 = jax.random.normal(k_x3, (B3, Cin, H3, W3), dtype=jnp.float32)
    xk3, *_ = proximal_mapping_forward(r3, w_embed, max_lanes_per_step=1024)
    xk3 = jax.block_until_ready(xk3)
    ref3 = conv_ref(r3, w_embed)
    np.testing.assert_allclose(np.asarray(xk3), np.asarray(ref3), atol=1e-4, rtol=1e-4)

    # --- 4) bf16 operand path (valid on v5e/v6e/v7x MXUs), f32 accumulate ---
    xk_bf16, *_ = proximal_mapping_forward(r, w_embed, compute_dtype=jnp.bfloat16)
    xk_bf16 = jax.block_until_ready(xk_bf16)
    np.testing.assert_allclose(np.asarray(xk_bf16), np.asarray(ref), atol=1e-1, rtol=1e-1)

    print("KERNEL_OK")
</pallas_src>

<mosaic_0001>
module attributes {stable_mosaic.version = 11 : i64} {
  func.func @kernel(%arg0: i32, %arg1: i32, %arg2: memref<1x5x256xf32, #tpu.memory_space<vmem>>, %arg3: memref<9x4x5xf32, #tpu.memory_space<vmem>>, %arg4: memref<1x4x256xf32, #tpu.memory_space<vmem>>, %arg5: memref<5x512xf32, #tpu.memory_space<vmem>>) attributes {dimension_semantics = [#tpu.dimension_semantics<parallel>, #tpu.dimension_semantics<parallel>], iteration_bounds = array<i64: 2, 1>, scalar_prefetch = 0 : i64, scratch_operands = 1 : i64, tpu.core_type = #tpu.core_type<tc>, window_params = [{transform_indices = @transform_0, window_bounds = array<i64: 1, 5, 256>}, {pipeline_mode = #tpu.pipeline_mode<synchronous>, transform_indices = @transform_1, window_bounds = array<i64: 9, 4, 5>}, {transform_indices = @transform_2, window_bounds = array<i64: 1, 4, 256>}]} {
    %c256_i32 = arith.constant 256 : i32
    %0 = arith.muli %arg1, %c256_i32 : i32
    %1 = tpu.assume_multiple %0, 128 : i32
    %c0 = arith.constant 0 : index
    %c0_0 = arith.constant 0 : index
    %2 = arith.index_cast %1 : i32 to index
    %3 = vector.load %arg2[%c0, %c0_0, %2] : memref<1x5x256xf32, #tpu.memory_space<vmem>>, vector<1x5x256xf32>
    %4 = vector.shape_cast %3 : vector<1x5x256xf32> to vector<5x256xf32>
    %c0_1 = arith.constant 0 : index
    %c128 = arith.constant 128 : index
    %5 = vector.load %arg5[%c0_1, %c128] : memref<5x512xf32, #tpu.memory_space<vmem>>, vector<5x256xf32>
    tpu.vector_store %arg5[%c0_1, %c128], %4 {strides = array<i32>} : memref<5x512xf32, #tpu.memory_space<vmem>>, vector<5x256xf32>,
    %c0_i32 = arith.constant 0 : i32
    %6 = arith.cmpi eq, %arg1, %c0_i32 : i32
    %7 = arith.extui %6 : i1 to i32
    %c0_i32_2 = arith.constant 0 : i32
    %8 = arith.cmpi ne, %7, %c0_i32_2 : i32
    scf.if %8 {
      %cst_60 = arith.constant 0.000000e+00 : f32
      %102 = vector.broadcast %cst_60 : f32 to vector<5x128xf32>
      %c0_61 = arith.constant 0 : index
      %c0_62 = arith.constant 0 : index
      %103 = vector.load %arg5[%c0_61, %c0_62] : memref<5x512xf32, #tpu.memory_space<vmem>>, vector<5x128xf32>
      tpu.vector_store %arg5[%c0_61, %c0_62], %102 {strides = array<i32>} : memref<5x512xf32, #tpu.memory_space<vmem>>, vector<5x128xf32>,
    } else {
    }
    %c0_i32_3 = arith.constant 0 : i32
    %9 = arith.cmpi sgt, %arg1, %c0_i32_3 : i32
    %10 = arith.extui %9 : i1 to i32
    %c0_i32_4 = arith.constant 0 : i32
    %11 = arith.cmpi ne, %10, %c0_i32_4 : i32
    scf.if %11 {
      %c256_i32_60 = arith.constant 256 : i32
      %102 = arith.muli %arg1, %c256_i32_60 : i32
      %c128_i32 = arith.constant 128 : i32
      %103 = arith.subi %102, %c128_i32 : i32
      %104 = tpu.assume_multiple %103, 128 : i32
      %c0_61 = arith.constant 0 : index
      %c0_62 = arith.constant 0 : index
      %105 = arith.index_cast %104 : i32 to index
      %106 = vector.load %arg2[%c0_61, %c0_62, %105] : memref<1x5x256xf32, #tpu.memory_space<vmem>>, vector<1x5x128xf32>
      %107 = vector.shape_cast %106 : vector<1x5x128xf32> to vector<5x128xf32>
      %c0_63 = arith.constant 0 : index
      %c0_64 = arith.constant 0 : index
      %108 = vector.load %arg5[%c0_63, %c0_64] : memref<5x512xf32, #tpu.memory_space<vmem>>, vector<5x128xf32>
      tpu.vector_store %arg5[%c0_63, %c0_64], %107 {strides = array<i32>} : memref<5x512xf32, #tpu.memory_space<vmem>>, vector<5x128xf32>,
    } else {
    }
    %c0_i32_5 = arith.constant 0 : i32
    %12 = arith.cmpi eq, %arg1, %c0_i32_5 : i32
    %13 = arith.extui %12 : i1 to i32
    %c0_i32_6 = arith.constant 0 : i32
    %14 = arith.cmpi ne, %13, %c0_i32_6 : i32
    scf.if %14 {
      %cst_60 = arith.constant 0.000000e+00 : f32
      %102 = vector.broadcast %cst_60 : f32 to vector<5x128xf32>
      %c0_61 = arith.constant 0 : index
      %c384 = arith.constant 384 : index
      %103 = vector.load %arg5[%c0_61, %c384] : memref<5x512xf32, #tpu.memory_space<vmem>>, vector<5x128xf32>
      tpu.vector_store %arg5[%c0_61, %c384], %102 {strides = array<i32>} : memref<5x512xf32, #tpu.memory_space<vmem>>, vector<5x128xf32>,
    } else {
    }
    %c0_i32_7 = arith.constant 0 : i32
    %15 = arith.cmpi slt, %arg1, %c0_i32_7 : i32
    %16 = arith.extui %15 : i1 to i32
    %c0_i32_8 = arith.constant 0 : i32
    %17 = arith.cmpi ne, %16, %c0_i32_8 : i32
    scf.if %17 {
      %c1_i32_60 = arith.constant 1 : i32
      %102 = arith.addi %arg1, %c1_i32_60 : i32
      %c256_i32_61 = arith.constant 256 : i32
      %103 = arith.muli %102, %c256_i32_61 : i32
      %104 = tpu.assume_multiple %103, 128 : i32
      %c0_62 = arith.constant 0 : index
      %c0_63 = arith.constant 0 : index
      %105 = arith.index_cast %104 : i32 to index
      %106 = vector.load %arg2[%c0_62, %c0_63, %105] : memref<1x5x256xf32, #tpu.memory_space<vmem>>, vector<1x5x128xf32>
      %107 = vector.shape_cast %106 : vector<1x5x128xf32> to vector<5x128xf32>
      %c0_64 = arith.constant 0 : index
      %c384 = arith.constant 384 : index
      %108 = vector.load %arg5[%c0_64, %c384] : memref<5x512xf32, #tpu.memory_space<vmem>>, vector<5x128xf32>
      tpu.vector_store %arg5[%c0_64, %c384], %107 {strides = array<i32>} : memref<5x512xf32, #tpu.memory_space<vmem>>, vector<5x128xf32>,
    } else {
    }
    %18 = tpu.iota {dimensions = array<i32: 1>} : vector<1x256xi32>
    %c16_i32 = arith.constant 16 : i32
    %c0_i32_9 = arith.constant 0 : i32
    %19 = arith.cmpi eq, %c16_i32, %c0_i32_9 : i32
    %c1_i32 = arith.constant 1 : i32
    %20 = arith.select %19, %c1_i32, %c16_i32 : i32
    %21 = vector.broadcast %20 : i32 to vector<1x256xi32>
    %22 = arith.remsi %18, %21 : vector<1x256xi32>
    %c0_i32_10 = arith.constant 0 : i32
    %23 = vector.broadcast %c0_i32_10 : i32 to vector<1x256xi32>
    %24 = arith.cmpi ne, %22, %23 : vector<1x256xi32>
    %c0_i32_11 = arith.constant 0 : i32
    %25 = vector.broadcast %c0_i32_11 : i32 to vector<1x256xi32>
    %26 = arith.cmpi slt, %22, %25 : vector<1x256xi32>
    %c0_i32_12 = arith.constant 0 : i32
    %27 = arith.cmpi slt, %20, %c0_i32_12 : i32
    %28 = vector.broadcast %27 : i1 to vector<1x256xi1>
    %29 = vector.broadcast %28 : vector<1x256xi1> to vector<1x256xi1>
    %30 = arith.xori %26, %29 : vector<1x256xi1>
    %31 = arith.andi %30, %24 : vector<1x256xi1>
    %32 = vector.broadcast %20 : i32 to vector<1x256xi32>
    %33 = arith.addi %22, %32 : vector<1x256xi32>
    %34 = arith.select %31, %33, %22 : vector<1x256xi1>, vector<1x256xi32>
    %c0_i32_13 = arith.constant 0 : i32
    %35 = vector.broadcast %c0_i32_13 : i32 to vector<1x256xi32>
    %36 = arith.cmpi sgt, %34, %35 : vector<1x256xi32>
    %c15_i32 = arith.constant 15 : i32
    %37 = vector.broadcast %c15_i32 : i32 to vector<1x256xi32>
    %38 = arith.cmpi slt, %34, %37 : vector<1x256xi32>
    %cst = arith.constant 0.000000e+00 : f32
    %39 = vector.broadcast %cst : f32 to vector<4x256xf32>
    %cst_14 = arith.constant 0.000000e+00 : f32
    %40 = vector.broadcast %cst_14 : f32 to vector<4x256xf32>
    %c0_15 = arith.constant 0 : index
    %c111 = arith.constant 111 : index
    %41 = vector.load %arg5[%c0_15, %c111] : memref<5x512xf32, #tpu.memory_space<vmem>>, vector<5x256xf32>
    %c0_16 = arith.constant 0 : index
    %c0_17 = arith.constant 0 : index
    %c0_18 = arith.constant 0 : index
    %42 = vector.load %arg3[%c0_16, %c0_17, %c0_18] : memref<9x4x5xf32, #tpu.memory_space<vmem>>, vector<1x4x5xf32>
    %43 = vector.shape_cast %42 : vector<1x4x5xf32> to vector<4x5xf32>
    %cst_19 = arith.constant dense<0.000000e+00> : vector<4x256xf32>
    %44 = tpu.matmul %43, %41, %cst_19 {dimension_numbers = #tpu.dot_dimension_numbers<[1], [0], [0], [1], [0, 0, 1, 1], [], []>} : vector<4x5xf32>, vector<5x256xf32>, vector<4x256xf32> -> vector<4x256xf32>
    %45 = arith.addf %40, %44 : vector<4x256xf32>
    %c0_20 = arith.constant 0 : index
    %c127 = arith.constant 127 : index
    %46 = vector.load %arg5[%c0_20, %c127] : memref<5x512xf32, #tpu.memory_space<vmem>>, vector<5x256xf32>
    %c3 = arith.constant 3 : index
    %c0_21 = arith.constant 0 : index
    %c0_22 = arith.constant 0 : index
    %47 = vector.load %arg3[%c3, %c0_21, %c0_22] : memref<9x4x5xf32, #tpu.memory_space<vmem>>, vector<1x4x5xf32>
    %48 = vector.shape_cast %47 : vector<1x4x5xf32> to vector<4x5xf32>
    %cst_23 = arith.constant dense<0.000000e+00> : vector<4x256xf32>
    %49 = tpu.matmul %48, %46, %cst_23 {dimension_numbers = #tpu.dot_dimension_numbers<[1], [0], [0], [1], [0, 0, 1, 1], [], []>} : vector<4x5xf32>, vector<5x256xf32>, vector<4x256xf32> -> vector<4x256xf32>
    %50 = arith.addf %45, %49 : vector<4x256xf32>
    %c0_24 = arith.constant 0 : index
    %c143 = arith.constant 143 : index
    %51 = vector.load %arg5[%c0_24, %c143] : memref<5x512xf32, #tpu.memory_space<vmem>>, vector<5x256xf32>
    %c6 = arith.constant 6 : index
    %c0_25 = arith.constant 0 : index
    %c0_26 = arith.constant 0 : index
    %52 = vector.load %arg3[%c6, %c0_25, %c0_26] : memref<9x4x5xf32, #tpu.memory_space<vmem>>, vector<1x4x5xf32>
    %53 = vector.shape_cast %52 : vector<1x4x5xf32> to vector<4x5xf32>
    %cst_27 = arith.constant dense<0.000000e+00> : vector<4x256xf32>
    %54 = tpu.matmul %53, %51, %cst_27 {dimension_numbers = #tpu.dot_dimension_numbers<[1], [0], [0], [1], [0, 0, 1, 1], [], []>} : vector<4x5xf32>, vector<5x256xf32>, vector<4x256xf32> -> vector<4x256xf32>
    %55 = arith.addf %50, %54 : vector<4x256xf32>
    %cst_28 = arith.constant 0.000000e+00 : f32
    %56 = vector.shape_cast %36 : vector<1x256xi1> to vector<1x256xi1>
    %57 = vector.broadcast %56 : vector<1x256xi1> to vector<4x256xi1>
    %58 = vector.broadcast %cst_28 : f32 to vector<4x256xf32>
    %59 = arith.select %57, %55, %58 : vector<4x256xi1>, vector<4x256xf32>
    %60 = arith.addf %39, %59 : vector<4x256xf32>
    %cst_29 = arith.constant 0.000000e+00 : f32
    %61 = vector.broadcast %cst_29 : f32 to vector<4x256xf32>
    %c0_30 = arith.constant 0 : index
    %c112 = arith.constant 112 : index
    %62 = vector.load %arg5[%c0_30, %c112] : memref<5x512xf32, #tpu.memory_space<vmem>>, vector<5x256xf32>
    %c1 = arith.constant 1 : index
    %c0_31 = arith.constant 0 : index
    %c0_32 = arith.constant 0 : index
    %63 = vector.load %arg3[%c1, %c0_31, %c0_32] : memref<9x4x5xf32, #tpu.memory_space<vmem>>, vector<1x4x5xf32>
    %64 = vector.shape_cast %63 : vector<1x4x5xf32> to vector<4x5xf32>
    %cst_33 = arith.constant dense<0.000000e+00> : vector<4x256xf32>
    %65 = tpu.matmul %64, %62, %cst_33 {dimension_numbers = #tpu.dot_dimension_numbers<[1], [0], [0], [1], [0, 0, 1, 1], [], []>} : vector<4x5xf32>, vector<5x256xf32>, vector<4x256xf32> -> vector<4x256xf32>
    %66 = arith.addf %61, %65 : vector<4x256xf32>
    %c0_34 = arith.constant 0 : index
    %c128_35 = arith.constant 128 : index
    %67 = vector.load %arg5[%c0_34, %c128_35] : memref<5x512xf32, #tpu.memory_space<vmem>>, vector<5x256xf32>
    %c4 = arith.constant 4 : index
    %c0_36 = arith.constant 0 : index
    %c0_37 = arith.constant 0 : index
    %68 = vector.load %arg3[%c4, %c0_36, %c0_37] : memref<9x4x5xf32, #tpu.memory_space<vmem>>, vector<1x4x5xf32>
    %69 = vector.shape_cast %68 : vector<1x4x5xf32> to vector<4x5xf32>
    %cst_38 = arith.constant dense<0.000000e+00> : vector<4x256xf32>
    %70 = tpu.matmul %69, %67, %cst_38 {dimension_numbers = #tpu.dot_dimension_numbers<[1], [0], [0], [1], [0, 0, 1, 1], [], []>} : vector<4x5xf32>, vector<5x256xf32>, vector<4x256xf32> -> vector<4x256xf32>
    %71 = arith.addf %66, %70 : vector<4x256xf32>
    %c0_39 = arith.constant 0 : index
    %c144 = arith.constant 144 : index
    %72 = vector.load %arg5[%c0_39, %c144] : memref<5x512xf32, #tpu.memory_space<vmem>>, vector<5x256xf32>
    %c7 = arith.constant 7 : index
    %c0_40 = arith.constant 0 : index
    %c0_41 = arith.constant 0 : index
    %73 = vector.load %arg3[%c7, %c0_40, %c0_41] : memref<9x4x5xf32, #tpu.memory_space<vmem>>, vector<1x4x5xf32>
    %74 = vector.shape_cast %73 : vector<1x4x5xf32> to vector<4x5xf32>
    %cst_42 = arith.constant dense<0.000000e+00> : vector<4x256xf32>
    %75 = tpu.matmul %74, %72, %cst_42 {dimension_numbers = #tpu.dot_dimension_numbers<[1], [0], [0], [1], [0, 0, 1, 1], [], []>} : vector<4x5xf32>, vector<5x256xf32>, vector<4x256xf32> -> vector<4x256xf32>
    %76 = arith.addf %71, %75 : vector<4x256xf32>
    %77 = arith.addf %60, %76 : vector<4x256xf32>
    %cst_43 = arith.constant 0.000000e+00 : f32
    %78 = vector.broadcast %cst_43 : f32 to vector<4x256xf32>
    %c0_44 = arith.constant 0 : index
    %c113 = arith.constant 113 : index
    %79 = vector.load %arg5[%c0_44, %c113] : memref<5x512xf32, #tpu.memory_space<vmem>>, vector<5x256xf32>
    %c2 = arith.constant 2 : index
    %c0_45 = arith.constant 0 : index
    %c0_46 = arith.constant 0 : index
    %80 = vector.load %arg3[%c2, %c0_45, %c0_46] : memref<9x4x5xf32, #tpu.memory_space<vmem>>, vector<1x4x5xf32>
    %81 = vector.shape_cast %80 : vector<1x4x5xf32> to vector<4x5xf32>
    %cst_47 = arith.constant dense<0.000000e+00> : vector<4x256xf32>
    %82 = tpu.matmul %81, %79, %cst_47 {dimension_numbers = #tpu.dot_dimension_numbers<[1], [0], [0], [1], [0, 0, 1, 1], [], []>} : vector<4x5xf32>, vector<5x256xf32>, vector<4x256xf32> -> vector<4x256xf32>
    %83 = arith.addf %78, %82 : vector<4x256xf32>
    %c0_48 = arith.constant 0 : index
    %c129 = arith.constant 129 : index
    %84 = vector.load %arg5[%c0_48, %c129] : memref<5x512xf32, #tpu.memory_space<vmem>>, vector<5x256xf32>
    %c5 = arith.constant 5 : index
    %c0_49 = arith.constant 0 : index
    %c0_50 = arith.constant 0 : index
    %85 = vector.load %arg3[%c5, %c0_49, %c0_50] : memref<9x4x5xf32, #tpu.memory_space<vmem>>, vector<1x4x5xf32>
    %86 = vector.shape_cast %85 : vector<1x4x5xf32> to vector<4x5xf32>
    %cst_51 = arith.constant dense<0.000000e+00> : vector<4x256xf32>
    %87 = tpu.matmul %86, %84, %cst_51 {dimension_numbers = #tpu.dot_dimension_numbers<[1], [0], [0], [1], [0, 0, 1, 1], [], []>} : vector<4x5xf32>, vector<5x256xf32>, vector<4x256xf32> -> vector<4x256xf32>
    %88 = arith.addf %83, %87 : vector<4x256xf32>
    %c0_52 = arith.constant 0 : index
    %c145 = arith.constant 145 : index
    %89 = vector.load %arg5[%c0_52, %c145] : memref<5x512xf32, #tpu.memory_space<vmem>>, vector<5x256xf32>
    %c8 = arith.constant 8 : index
    %c0_53 = arith.constant 0 : index
    %c0_54 = arith.constant 0 : index
    %90 = vector.load %arg3[%c8, %c0_53, %c0_54] : memref<9x4x5xf32, #tpu.memory_space<vmem>>, vector<1x4x5xf32>
    %91 = vector.shape_cast %90 : vector<1x4x5xf32> to vector<4x5xf32>
    %cst_55 = arith.constant dense<0.000000e+00> : vector<4x256xf32>
    %92 = tpu.matmul %91, %89, %cst_55 {dimension_numbers = #tpu.dot_dimension_numbers<[1], [0], [0], [1], [0, 0, 1, 1], [], []>} : vector<4x5xf32>, vector<5x256xf32>, vector<4x256xf32> -> vector<4x256xf32>
    %93 = arith.addf %88, %92 : vector<4x256xf32>
    %cst_56 = arith.constant 0.000000e+00 : f32
    %94 = vector.shape_cast %38 : vector<1x256xi1> to vector<1x256xi1>
    %95 = vector.broadcast %94 : vector<1x256xi1> to vector<4x256xi1>
    %96 = vector.broadcast %cst_56 : f32 to vector<4x256xf32>
    %97 = arith.select %95, %93, %96 : vector<4x256xi1>, vector<4x256xf32>
    %98 = arith.addf %77, %97 : vector<4x256xf32>
    %c0_57 = arith.constant 0 : index
    %c0_58 = arith.constant 0 : index
    %c0_59 = arith.constant 0 : index
    %99 = vector.load %arg4[%c0_57, %c0_58, %c0_59] : memref<1x4x256xf32, #tpu.memory_space<vmem>>, vector<1x4x256xf32>
    %100 = vector.shape_cast %99 : vector<1x4x256xf32> to vector<4x256xf32>
    %101 = vector.shape_cast %98 : vector<4x256xf32> to vector<1x4x256xf32>
    tpu.vector_store %arg4[%c0_57, %c0_58, %c0_59], %101 {strides = array<i32>} : memref<1x4x256xf32, #tpu.memory_space<vmem>>, vector<1x4x256xf32>,
    return
  }
  func.func @transform_0(%arg0: i32, %arg1: i32) -> (i32, i32, i32) {
    %c0_i32 = arith.constant 0 : i32
    %c0_i32_0 = arith.constant 0 : i32
    %c0_i32_1 = arith.constant 0 : i32
    return %arg0, %c0_i32, %c0_i32_0 : i32, i32, i32
  }
  func.func @transform_1(%arg0: i32, %arg1: i32) -> (i32, i32, i32) {
    %c0_i32 = arith.constant 0 : i32
    %c0_i32_0 = arith.constant 0 : i32
    %c0_i32_1 = arith.constant 0 : i32
    %c0_i32_2 = arith.constant 0 : i32
    return %c0_i32, %c0_i32_0, %c0_i32_1 : i32, i32, i32
  }
  func.func @transform_2(%arg0: i32, %arg1: i32) -> (i32, i32, i32) {
    %c0_i32 = arith.constant 0 : i32
    %c0_i32_0 = arith.constant 0 : i32
    return %arg0, %c0_i32, %arg1 : i32, i32, i32
  }
}

</mosaic_0001>

<llo_original>
// kernel: tpu_custom_call.1
$region0: #{tpu_custom_call.1}
  #allocation0 [shape = 'u32[]', space=smem, size = 0x4, offset = 0x4, fixed_abs, tag = 'smem constant byte address 0x4 - core index']
  #allocation1 [shape = 'u32[144,128]{1,0:T(1,128)}', space=vmem, size = 0x12000, scoped, tag = 'internal scratch']
  #allocation2 [shape = 'f32[5,512]{1,0:T(8,128)}', space=vmem, size = 0x4000, scoped, tag = 'scratch operand']
  %s0 = inlined_call_operand.vmem [shape: f32[2,5,256], index: 0, kind: input, shape index: {}]
  %s1 = inlined_call_operand.vmem [shape: f32[9,4,5], index: 1, kind: input, shape index: {}]
  %s2 = inlined_call_operand.hbm [shape: f32[2,4,256], index: 2, kind: output, shape index: {}]
  %s3 = sld [smem:[#allocation0]]
  $region57: #{tpu_custom_call.1} parent=0
    _
  %s5 = ssub.s32 1, %s3
  %s6 = scalar_select 0, %s5, %s3
  $region1: #{tpu_custom_call.1} parent=0
    #allocation3 [shape = 'u8[8192]{0}', space=vmem, size = 0x2000, scoped, tag = 'output window, operand 0']
    #allocation4 [shape = 's32[2]{0}', space=sflag, size = 0x8, scoped, tag = 'scoped memory for tpu_custom_call.1']
    %7 = vsyncpa [#allocation4], 0
    %s8 = scalar_lea.sflag [#allocation4], 1
    %9 = vsyncpa %s8, 0
    loop: start=0, step=1, limit=4
    $region2: #{tpu_custom_call.1} parent=1 // loop_pre_header
      _
    $region3: #{tpu_custom_call.1} parent=1 // loop_header
      %s11 = sphi 0, %s15
      %p12 = scmp.ge.s32.totalorder %s11, 4
      %s18 = sphi 0, %s30
      %s19 = sphi 0, %s26
      %s20 = sphi 0, %s18
      %s21 = sphi 0, %s19
      %s22 = sphi 0, %s20
      %s23 = sphi 0, %s21
      %s33 = sphi 0, %s35
      %s36 = sphi 0, %s33
      %s37 = sphi 0, %s36
      %s53 = sphi 0, %s37
      %s57 = sphi 0, %s57
      %s59 = sphi 0, %s57
      %s60 = sphi 0, %s59
      %s74 = sphi 0, %s60
      %s82 = sphi 0, %s84
      %s85 = sphi 0, %s82
      %s86 = sphi 0, %s85
      %s102 = sphi 0, %s86
    $region4: #{tpu_custom_call.1} parent=1 // loop_header_branch
      %14 = sbr.rel (%p12) target = $region8
    $region5: #{tpu_custom_call.1} parent=1 // loop_body
      %s16 = ssub.s32 %s11, 1
      %s17 = ssub.s32 %s11, 2
      %s24 = sadd.s32 1, %s19
      %p25 = scmp.ge.s32.totalorder %s24, 1
      %s26 = scalar_select %p25, 0, %s24
      %s27 = sadd.s32 1, %s18
      %s28 = scalar_select %p25, %s27, %s18
      %p29 = scmp.ge.s32.totalorder %s28, 2
      %s30 = scalar_select %p29, 0, %s28
      %s31 = ssub.s32 %s18, %s30
      %p32 = scmp.eq.s32.totalorder %s31, 0
      %s34 = sadd.s32 %s33, 1
      %s35 = scalar_select %p32, %s33, %s34
      %p38 = pneg %p32
      %p39 = scmp.eq.s32.totalorder %s11, 1
      %p40 = por %p38, %p39
      %p41 = scmp.ne.s32.totalorder %s33, %s36
      %p42 = scmp.eq.s32.totalorder %s11, 0
      %p43 = por %p41, %p42
      %p44 = scmp.ne.s32.totalorder %s33, %s36
      %p45 = scmp.eq.s32.totalorder %s16, 1
      %p46 = por %p44, %p45
      %p47 = scmp.ne.s32.totalorder %s36, %s37
      %p48 = scmp.eq.s32.totalorder %s16, 0
      %p49 = por %p47, %p48
      %p50 = scmp.ne.s32.totalorder %s36, %s37
      %p51 = scmp.eq.s32.totalorder %s17, 1
      %p52 = por %p50, %p51
      %p54 = scmp.ne.s32.totalorder %s37, %s53
      %p55 = scmp.eq.s32.totalorder %s17, 0
      %p56 = por %p54, %p55
      %s58 = sadd.s32 %s57, 1
      %p61 = scmp.eq.s32.totalorder %s11, 1
      %p62 = scmp.ne.s32.totalorder %s57, %s59
      %p63 = scmp.eq.s32.totalorder %s11, 0
      %p64 = por %p62, %p63
      %p65 = scmp.ne.s32.totalorder %s57, %s59
      %p66 = scmp.eq.s32.totalorder %s16, 1
      %p67 = por %p65, %p66
      %p68 = scmp.ne.s32.totalorder %s59, %s60
      %p69 = scmp.eq.s32.totalorder %s16, 0
      %p70 = por %p68, %p69
      %p71 = scmp.ne.s32.totalorder %s59, %s60
      %p72 = scmp.eq.s32.totalorder %s17, 1
      %p73 = por %p71, %p72
      %p75 = scmp.ne.s32.totalorder %s60, %s74
      %p76 = scmp.eq.s32.totalorder %s17, 0
      %p77 = por %p75, %p76
      %s78 = ssub.s32 %s18, %s30
      %s79 = ssub.s32 %s19, %s26
      %s80 = sor.u32 %s78, %s79
      %p81 = scmp.eq.s32.totalorder %s80, 0
      %s83 = sadd.s32 %s82, 1
      %s84 = scalar_select %p81, %s82, %s83
      %p87 = pneg %p81
      %p88 = scmp.eq.s32.totalorder %s11, 1
      %p89 = por %p87, %p88
      %p90 = scmp.ne.s32.totalorder %s82, %s85
      %p91 = scmp.eq.s32.totalorder %s11, 0
      %p92 = por %p90, %p91
      %p93 = scmp.ne.s32.totalorder %s82, %s85
      %p94 = scmp.eq.s32.totalorder %s16, 1
      %p95 = por %p93, %p94
      %p96 = scmp.ne.s32.totalorder %s85, %s86
      %p97 = scmp.eq.s32.totalorder %s16, 0
      %p98 = por %p96, %p97
      %p99 = scmp.ne.s32.totalorder %s85, %s86
      %p100 = scmp.eq.s32.totalorder %s17, 1
      %p101 = por %p99, %p100
      %p103 = scmp.ne.s32.totalorder %s86, %s102
      %p104 = scmp.eq.s32.totalorder %s17, 0
      %p105 = por %p103, %p104
      %p106 = scmp.le.s32.totalorder 1, %s11
      %p107 = scmp.lt.s32.totalorder %s11, 3
      %p108 = pnand %p106, %p107
      %p109 = pneg %p108
      // Predicated region
      $region9: #{tpu_custom_call.1} parent=5 // pred_check
        _
      $region10: #{tpu_custom_call.1} parent=5 // pred_check_branch
        %111 = sbr.rel (%p108) target = $region12
      $region11: #{tpu_custom_call.1} parent=5 // pred_region
        %s112 = ssub.s32 %s11, 1
        // Predicated region
        $region13: #{tpu_custom_call.1} parent=11 // pred_check
          %p113 = pneg %p70
        $region14: #{tpu_custom_call.1} parent=11 // pred_check_branch
          %115 = sbr.rel (%p113) target = $region16
        $region15: #{tpu_custom_call.1} parent=11 // pred_region
          _
        $region16: #{tpu_custom_call.1} parent=11 // pred_fallthru
          _
      $region12: #{tpu_custom_call.1} parent=5 // pred_fallthru
        _
      %p116 = scmp.lt.s32.totalorder %s11, 2
      // Predicated region
      $region17: #{tpu_custom_call.1} parent=5 // pred_check
        %p117 = pneg %p116
      $region18: #{tpu_custom_call.1} parent=5 // pred_check_branch
        %119 = sbr.rel (%p117) target = $region20
      $region19: #{tpu_custom_call.1} parent=5 // pred_region
        // Predicated region
        $region21: #{tpu_custom_call.1} parent=19 // pred_check
          %p120 = pneg %p43
        $region22: #{tpu_custom_call.1} parent=19 // pred_check_branch
          %122 = sbr.rel (%p120) target = $region24
        $region23: #{tpu_custom_call.1} parent=19 // pred_region
          %p123 = scmp.lt.s32.totalorder %s18, 1
          %s124 = scalar_select %p123, %s18, 1
          %s125 = smul.addr %s124, 2
          %s126 = smul.addr %s125, 8
          %s127 = scalar_lea.vmem %s0, %s126
        $region24: #{tpu_custom_call.1} parent=19 // pred_fallthru
          _
      $region20: #{tpu_custom_call.1} parent=5 // pred_fallthru
        _
      %p128 = scmp.le.s32.totalorder 1, %s11
      %p129 = scmp.lt.s32.totalorder %s11, 3
      %p130 = pnand %p128, %p129
      %p131 = pneg %p130
      // Predicated region
      $region25: #{tpu_custom_call.1} parent=5 // pred_check
        _
      $region26: #{tpu_custom_call.1} parent=5 // pred_check_branch
        %133 = sbr.rel (%p130) target = $region28
      $region27: #{tpu_custom_call.1} parent=5 // pred_region
        %s134 = ssub.s32 %s11, 1
        %p135 = scmp.lt.s32.totalorder %s20, 1
        %s136 = scalar_select %p135, %s20, 1
        %s137 = smul.addr %s136, 2
        %s138 = smul.addr %s137, 8
        %s139 = scalar_lea.vmem %s0, %s138
        %p140 = pneg %p49
        %p141 = pneg %p46
        %p142 = pneg %p70
        %p143 = pneg %p67
        %p144 = pneg %p98
        %p145 = pneg %p95
        %s146 = sand.u32 %s85, 1
        %s147 = scalar_lea.sflag [#allocation4], %s146
        %s148 = sand.u32 %s85, 1
        %s149 = smul.addr %s148, 8
        %s150 = scalar_lea.vmem [#allocation3], %s149
        %p151 = scmp.lt.s32.totalorder %s20, 1
        %s152 = scalar_select %p151, %s20, 1
        %s153 = smul.addr %s152, 2
        %s154 = smul.addr %s153, 8
        %s155 = scalar_lea.vmem %s0, %s154
        %s156 = smul.u32 2, %s21
        %s157 = smul.u32 %s21, 256
        %s158 = sshra.s32 %s157, 7
        %s159 = sand.u32 %s157, 127
        %s160 = smul.addr %s158, 8
        %s161 = scalar_lea.vmem %s155, %s160
        %v162 = vld [vmem:[%s161] sm:$0x1f]
        %v163 = vld [vmem:[%s161 + $0x8] sm:$0x1f]
        %164 = vst [vmem:[#allocation2 + $0x8] sm:$0x1f] %v162
        %165 = vst [vmem:[#allocation2 + $0x10] sm:$0x1f] %v163
        %p166 = scmp.eq.s32.totalorder %s21, 0
        // Predicated region
        $region29: #{tpu_custom_call.1} parent=27 // pred_check
          %p167 = pneg %p166
        $region30: #{tpu_custom_call.1} parent=27 // pred_check_branch
          %169 = sbr.rel (%p167) target = $region32
        $region31: #{tpu_custom_call.1} parent=27 // pred_region
          %170 = vst [vmem:[#allocation2] sm:$0x1f] 0.0
        $region32: #{tpu_custom_call.1} parent=27 // pred_fallthru
          _
        %p171 = scmp.gt.s32.totalorder %s21, 0
        // Predicated region
        $region33: #{tpu_custom_call.1} parent=27 // pred_check
          %p172 = pneg %p171
        $region34: #{tpu_custom_call.1} parent=27 // pred_check_branch
          %174 = sbr.rel (%p172) target = $region36
        $region35: #{tpu_custom_call.1} parent=27 // pred_region
          %s175 = ssub.s32 %s157, 128
          %s176 = sshra.s32 %s175, 7
          %s177 = sand.u32 %s175, 127
          %s178 = smul.addr %s176, 8
          %s179 = scalar_lea.vmem %s155, %s178
          %v180 = vld [vmem:[%s179] sm:$0x1f]
          %181 = vst [vmem:[#allocation2] sm:$0x1f] %v180
        $region36: #{tpu_custom_call.1} parent=27 // pred_fallthru
          _
        // Predicated region
        $region37: #{tpu_custom_call.1} parent=27 // pred_check
          %p182 = pneg %p166
        $region38: #{tpu_custom_call.1} parent=27 // pred_check_branch
          %184 = sbr.rel (%p182) target = $region40
        $region39: #{tpu_custom_call.1} parent=27 // pred_region
          %185 = vst [vmem:[#allocation2 + $0x18] sm:$0x1f] 0.0
        $region40: #{tpu_custom_call.1} parent=27 // pred_fallthru
          _
        %p186 = scmp.lt.s32.totalorder %s21, 0
        // Predicated region
        $region41: #{tpu_custom_call.1} parent=27 // pred_check
          %p187 = pneg %p186
        $region42: #{tpu_custom_call.1} parent=27 // pred_check_branch
          %189 = sbr.rel (%p187) target = $region44
        $region43: #{tpu_custom_call.1} parent=27 // pred_region
          %s190 = sadd.s32 %s21, 1
          %s191 = smul.u32 %s190, 256
          %s192 = sshra.s32 %s191, 7
          %s193 = sand.u32 %s191, 127
          %s194 = smul.addr %s192, 8
          %s195 = scalar_lea.vmem %s155, %s194
          %v196 = vld [vmem:[%s195] sm:$0x1f]
          %197 = vst [vmem:[#allocation2 + $0x18] sm:$0x1f] %v196
        $region44: #{tpu_custom_call.1} parent=27 // pred_fallthru
          _
        %v198 = vlaneseq
        %v199 = vand.u32 %v198, 127
        %v200 = vadd.s32 %v199, 128
        %vm201 = vcmp.lt.s32.totalorder %v199, 0
        %v202 = vsub.s32 0, %v199
        %v203 = vsel %vm201, %v202, %v199
        %v204 = vshrl.u32 %v203, 4
        %v205 = vand.u32 %v203, 15
        %v206 = vsub.s32 0, %v205
        %v207 = vsel %vm201, %v206, %v205
        %vm208 = vcmp.lt.s32.totalorder %v200, 0
        %v209 = vsub.s32 0, %v200
        %v210 = vsel %vm208, %v209, %v200
        %v211 = vshrl.u32 %v210, 4
        %v212 = vand.u32 %v210, 15
        %v213 = vsub.s32 0, %v212
        %v214 = vsel %vm208, %v213, %v212
        %vm215 = vcmp.ne.s32.totalorder %v207, 0
        %vm216 = vcmp.ne.s32.totalorder %v214, 0
        %vm217 = vcmp.lt.s32.totalorder %v207, 0
        %vm218 = vcmp.lt.s32.totalorder %v214, 0
        %vm219 = vmand %vm217, %vm215
        %vm220 = vmand %vm218, %vm216
        %v221 = vadd.s32 %v207, 16
        %v222 = vadd.s32 %v214, 16
        %v223 = vsel %vm219, %v221, %v207
        %v224 = vsel %vm220, %v222, %v214
        %vm225 = vcmp.gt.s32.totalorder %v223, 0
        %vm226 = vcmp.gt.s32.totalorder %v224, 0
        %vm227 = vcmp.lt.s32.totalorder %v223, 15
        %vm228 = vcmp.lt.s32.totalorder %v224, 15
        %v229 = vld [vmem:[#allocation2] sm:$0x1f]
        %v230 = vld [vmem:[#allocation2 + $0x8] sm:$0x1f]
        %v231 = vld [vmem:[#allocation2 + $0x10] sm:$0x1f]
        %v232 = vld [vmem:[%s1] sm:$0xf]
        %s233 = scalar_lea.vmem %s1, 12
        %v234 = vld [vmem:[%s233] sm:$0xf]
        %238 = vrot.lane.b32.xlu0 %v229, 1
        %v239 = vpop.permute.xlu0 %238
        %240 = vrot.lane.b32.xlu0 %v230, 1
        %v241 = vpop.permute.xlu0 %240
        %242 = vrot.lane.b32.xlu0 %v231, 1
        %v243 = vpop.permute.xlu0 %242
        %vm244 = vcmask 7168
        %v245 = vsel %vm244, %v239, %v241
        %v246 = vsel %vm244, %v241, %v243
        %vm247 = vcmask 39936
        %v249 = vsel %vm247, %v234, 0
        %vm251 = vcmask 1044480
        %v252 = vsel %vm251, %v245, 0
        %v254 = vsel %vm251, %v246, 0
        %256 = vmatprep.subr.mxu0 %v254
        %257 = vmatpush1.msra.mxu0 %v252
        %258 = vmatprep.subr.mxu0 0.0
        %259 = vmatpush1.msra.mxu0 0.0
        %260 = vmatprep.subr.mxu0 0.0
        %261 = vmatpush1.msra.mxu0 0.0
        %262 = vmatprep.subr.mxu0 0.0
        %263 = vmatpush1.msra.mxu0 0.0
        %264 = vmatprep.subr.mxu0 0.0
        %265 = vmatpush1.msra.mxu0 0.0
        %266 = vmatprep.subr.mxu0 0.0
        %267 = vmatpush1.msra.mxu0 0.0
        %268 = vmatprep.subr.mxu0 0.0
        %269 = vmatpush1.msra.mxu0 0.0
        %270 = vmatprep.subr.mxu0 0.0
        %271 = vmatpush1.msra.mxu0 0.0
        %272 = vmatprep.subr.mxu0 0.0
        %273 = vmatpush1.msra.mxu0 0.0
        %274 = vmatprep.subr.mxu0 0.0
        %275 = vmatpush1.msra.mxu0 0.0
        %276 = vmatprep.subr.mxu0 0.0
        %277 = vmatpush1.msra.mxu0 0.0
        %278 = vmatprep.subr.mxu0 0.0
        %279 = vmatpush1.msra.mxu0 0.0
        %280 = vmatprep.subr.mxu0 0.0
        %281 = vmatpush1.msra.mxu0 0.0
        %282 = vmatprep.subr.mxu0 0.0
        %283 = vmatpush1.msra.mxu0 0.0
        %284 = vmatprep.subr.mxu0 0.0
        %285 = vmatpush1.msra.mxu0 0.0
        %286 = vmatprep.subr.mxu0 0.0
        %287 = vmatpush1.msra.mxu0 0.0
        %288 = vmatprep.subr.mxu0 0.0
        %289 = vmatpush1.msra.mxu0 0.0
        %290 = vmatprep.subr.mxu0 0.0
        %291 = vmatpush1.msra.mxu0 0.0
        %292 = vmatprep.subr.mxu0 0.0
        %293 = vmatpush1.msra.mxu0 0.0
        %294 = vmatprep.subr.mxu0 0.0
        %295 = vmatpush1.msra.mxu0 0.0
        %296 = vmatprep.subr.mxu0 0.0
        %297 = vmatpush1.msra.mxu0 0.0
        %298 = vmatprep.subr.mxu0 0.0
        %299 = vmatpush1.msra.mxu0 0.0
        %300 = vmatprep.subr.mxu0 0.0
        %301 = vmatpush1.msra.mxu0 0.0
        %302 = vmatprep.subr.mxu0 0.0
        %303 = vmatpush1.msra.mxu0 0.0
        %304 = vmatprep.subr.mxu0 0.0
        %305 = vmatpush1.msra.mxu0 0.0
        %306 = vmatprep.subr.mxu0 0.0
        %307 = vmatpush1.msra.mxu0 0.0
        %308 = vmatprep.subr.mxu0 0.0
        %309 = vmatpush1.msra.mxu0 0.0
        %310 = vmatprep.subr.mxu0 0.0
        %311 = vmatpush1.msra.mxu0 0.0
        %312 = vmatprep.subr.mxu0 0.0
        %313 = vmatpush1.msra.mxu0 0.0
        %314 = vmatprep.subr.mxu0 0.0
        %315 = vmatpush1.msra.mxu0 0.0
        %316 = vmatprep.subr.mxu0 0.0
        %317 = vmatpush1.msra.mxu0 0.0
        %318 = vmatprep.subr.mxu0 0.0
        %319 = vmatpush1.msra.mxu0 0.0
        %320 = vmatprep.mubr.f32.mxu0 0.0
        %321 = vmatmul.mubr.f32.gmra.mrb[0].mxu0 %v249
        %v322 = vpop.f32.mrb[0].mxu0
        %v323 = vadd.f32 0.0, %v322
        %v324 = vpop.f32.mrb[0].mxu0
        %v325 = vadd.f32 0.0, %v324
        %326 = vdwg.mxu0
        %327 = vrot.lane.b32.xlu0 %v229, 17
        %v328 = vpop.permute.xlu0 %327
        %329 = vrot.lane.b32.xlu0 %v230, 17
        %v330 = vpop.permute.xlu0 %329
        %331 = vrot.lane.b32.xlu0 %v231, 17
        %v332 = vpop.permute.xlu0 %331
        %vm333 = vcmask 138240
        %v334 = vsel %vm333, %v328, %v330
        %v335 = vsel %vm333, %v330, %v332
        %v337 = vsel %vm247, %v232, 0
        %v339 = vsel %vm251, %v334, 0
        %v341 = vsel %vm251, %v335, 0
        %343 = vmatprep.subr.mxu0 %v341
        %344 = vmatpush1.msra.mxu0 %v339
        %345 = vmatprep.subr.mxu0 0.0
        %346 = vmatpush1.msra.mxu0 0.0
        %347 = vmatprep.subr.mxu0 0.0
        %348 = vmatpush1.msra.mxu0 0.0
        %349 = vmatprep.subr.mxu0 0.0
        %350 = vmatpush1.msra.mxu0 0.0
        %351 = vmatprep.subr.mxu0 0.0
        %352 = vmatpush1.msra.mxu0 0.0
        %353 = vmatprep.subr.mxu0 0.0
        %354 = vmatpush1.msra.mxu0 0.0
        %355 = vmatprep.subr.mxu0 0.0
        %356 = vmatpush1.msra.mxu0 0.0
        %357 = vmatprep.subr.mxu0 0.0
        %358 = vmatpush1.msra.mxu0 0.0
        %359 = vmatprep.subr.mxu0 0.0
        %360 = vmatpush1.msra.mxu0 0.0
        %361 = vmatprep.subr.mxu0 0.0
        %362 = vmatpush1.msra.mxu0 0.0
        %363 = vmatprep.subr.mxu0 0.0
        %364 = vmatpush1.msra.mxu0 0.0
        %365 = vmatprep.subr.mxu0 0.0
        %366 = vmatpush1.msra.mxu0 0.0
        %367 = vmatprep.subr.mxu0 0.0
        %368 = vmatpush1.msra.mxu0 0.0
        %369 = vmatprep.subr.mxu0 0.0
        %370 = vmatpush1.msra.mxu0 0.0
        %371 = vmatprep.subr.mxu0 0.0
        %372 = vmatpush1.msra.mxu0 0.0
        %373 = vmatprep.subr.mxu0 0.0
        %374 = vmatpush1.msra.mxu0 0.0
        %375 = vmatprep.subr.mxu0 0.0
        %376 = vmatpush1.msra.mxu0 0.0
        %377 = vmatprep.subr.mxu0 0.0
        %378 = vmatpush1.msra.mxu0 0.0
        %379 = vmatprep.subr.mxu0 0.0
        %380 = vmatpush1.msra.mxu0 0.0
        %381 = vmatprep.subr.mxu0 0.0
        %382 = vmatpush1.msra.mxu0 0.0
        %383 = vmatprep.subr.mxu0 0.0
        %384 = vmatpush1.msra.mxu0 0.0
        %385 = vmatprep.subr.mxu0 0.0
        %386 = vmatpush1.msra.mxu0 0.0
        %387 = vmatprep.subr.mxu0 0.0
        %388 = vmatpush1.msra.mxu0 0.0
        %389 = vmatprep.subr.mxu0 0.0
        %390 = vmatpush1.msra.mxu0 0.0
        %391 = vmatprep.subr.mxu0 0.0
        %392 = vmatpush1.msra.mxu0 0.0
        %393 = vmatprep.subr.mxu0 0.0
        %394 = vmatpush1.msra.mxu0 0.0
        %395 = vmatprep.subr.mxu0 0.0
        %396 = vmatpush1.msra.mxu0 0.0
        %397 = vmatprep.subr.mxu0 0.0
        %398 = vmatpush1.msra.mxu0 0.0
        %399 = vmatprep.subr.mxu0 0.0
        %400 = vmatpush1.msra.mxu0 0.0
        %401 = vmatprep.subr.mxu0 0.0
        %402 = vmatpush1.msra.mxu0 0.0
        %403 = vmatprep.subr.mxu0 0.0
        %404 = vmatpush1.msra.mxu0 0.0
        %405 = vmatprep.subr.mxu0 0.0
        %406 = vmatpush1.msra.mxu0 0.0
        %407 = vmatprep.mubr.f32.mxu0 0.0
        %408 = vmatmul.mubr.f32.gmra.mrb[0].mxu0 %v337
        %v409 = vpop.f32.mrb[0].mxu0
        %v410 = vadd.f32 %v323, %v409
        %v411 = vpop.f32.mrb[0].mxu0
        %v412 = vadd.f32 %v325, %v411
        %413 = vdwg.mxu0
        %v414 = vld [vmem:[#allocation2 + $0x8] sm:$0x1f]
        %v415 = vld [vmem:[#allocation2 + $0x10] sm:$0x1f]
        %v416 = vld [vmem:[#allocation2 + $0x18] sm:$0x1f]
        %s417 = scalar_lea.vmem %s1, 24
        %v418 = vld [vmem:[%s417] sm:$0xf]
        %422 = vrot.lane.b32.xlu0 %v414, 113
        %v423 = vpop.permute.xlu0 %422
        %424 = vrot.lane.b32.xlu0 %v415, 113
        %v425 = vpop.permute.xlu0 %424
        %426 = vrot.lane.b32.xlu0 %v416, 113
        %v427 = vpop.permute.xlu0 %426
        %vm428 = vcmask 924672
        %v429 = vsel %vm428, %v423, %v425
        %v430 = vsel %vm428, %v425, %v427
        %v432 = vsel %vm247, %v418, 0
        %v434 = vsel %vm251, %v429, 0
        %v436 = vsel %vm251, %v430, 0
        %438 = vmatprep.subr.mxu0 %v436
        %439 = vmatpush1.msra.mxu0 %v434
        %440 = vmatprep.subr.mxu0 0.0
        %441 = vmatpush1.msra.mxu0 0.0
        %442 = vmatprep.subr.mxu0 0.0
        %443 = vmatpush1.msra.mxu0 0.0
        %444 = vmatprep.subr.mxu0 0.0
        %445 = vmatpush1.msra.mxu0 0.0
        %446 = vmatprep.subr.mxu0 0.0
        %447 = vmatpush1.msra.mxu0 0.0
        %448 = vmatprep.subr.mxu0 0.0
        %449 = vmatpush1.msra.mxu0 0.0
        %450 = vmatprep.subr.mxu0 0.0
        %451 = vmatpush1.msra.mxu0 0.0
        %452 = vmatprep.subr.mxu0 0.0
        %453 = vmatpush1.msra.mxu0 0.0
        %454 = vmatprep.subr.mxu0 0.0
        %455 = vmatpush1.msra.mxu0 0.0
        %456 = vmatprep.subr.mxu0 0.0
        %457 = vmatpush1.msra.mxu0 0.0
        %458 = vmatprep.subr.mxu0 0.0
        %459 = vmatpush1.msra.mxu0 0.0
        %460 = vmatprep.subr.mxu0 0.0
        %461 = vmatpush1.msra.mxu0 0.0
        %462 = vmatprep.subr.mxu0 0.0
        %463 = vmatpush1.msra.mxu0 0.0
        %464 = vmatprep.subr.mxu0 0.0
        %465 = vmatpush1.msra.mxu0 0.0
        %466 = vmatprep.subr.mxu0 0.0
        %467 = vmatpush1.msra.mxu0 0.0
        %468 = vmatprep.subr.mxu0 0.0
        %469 = vmatpush1.msra.mxu0 0.0
        %470 = vmatprep.subr.mxu0 0.0
        %471 = vmatpush1.msra.mxu0 0.0
        %472 = vmatprep.subr.mxu0 0.0
        %473 = vmatpush1.msra.mxu0 0.0
        %474 = vmatprep.subr.mxu0 0.0
        %475 = vmatpush1.msra.mxu0 0.0
        %476 = vmatprep.subr.mxu0 0.0
        %477 = vmatpush1.msra.mxu0 0.0
        %478 = vmatprep.subr.mxu0 0.0
        %479 = vmatpush1.msra.mxu0 0.0
        %480 = vmatprep.subr.mxu0 0.0
        %481 = vmatpush1.msra.mxu0 0.0
        %482 = vmatprep.subr.mxu0 0.0
        %483 = vmatpush1.msra.mxu0 0.0
        %484 = vmatprep.subr.mxu0 0.0
        %485 = vmatpush1.msra.mxu0 0.0
        %486 = vmatprep.subr.mxu0 0.0
        %487 = vmatpush1.msra.mxu0 0.0
        %488 = vmatprep.subr.mxu0 0.0
        %489 = vmatpush1.msra.mxu0 0.0
        %490 = vmatprep.subr.mxu0 0.0
        %491 = vmatpush1.msra.mxu0 0.0
        %492 = vmatprep.subr.mxu0 0.0
        %493 = vmatpush1.msra.mxu0 0.0
        %494 = vmatprep.subr.mxu0 0.0
        %495 = vmatpush1.msra.mxu0 0.0
        %496 = vmatprep.subr.mxu0 0.0
        %497 = vmatpush1.msra.mxu0 0.0
        %498 = vmatprep.subr.mxu0 0.0
        %499 = vmatpush1.msra.mxu0 0.0
        %500 = vmatprep.subr.mxu0 0.0
        %501 = vmatpush1.msra.mxu0 0.0
        %502 = vmatprep.mubr.f32.mxu0 0.0
        %503 = vmatmul.mubr.f32.gmra.mrb[0].mxu0 %v432
        %v504 = vpop.f32.mrb[0].mxu0
        %v505 = vadd.f32 0.0, %v504
        %v506 = vpop.f32.mrb[0].mxu0
        %v507 = vadd.f32 0.0, %v506
        %508 = vdwg.mxu0
        %v509 = vadd.f32 %v410, %v505
        %v510 = vadd.f32 %v412, %v507
        %v511 = vsel %vm225, 1, 0
        %v512 = vsel %vm226, 1, 0
        %vm513 = vcmp.eq.s32.totalorder %v511, 1
        %vm514 = vcmp.eq.s32.totalorder %v512, 1
        %v515 = vsel %vm513, %v509, 0.0
        %v516 = vsel %vm514, %v510, 0.0
        %v517 = vadd.f32 %v515, 0.0
        %v518 = vadd.f32 %v516, 0.0
        %s519 = scalar_lea.vmem %s1, 4
        %v520 = vld [vmem:[%s519] sm:$0xf]
        %s521 = scalar_lea.vmem %s1, 16
        %v522 = vld [vmem:[%s521] sm:$0xf]
        %v524 = vsel %vm247, %v522, 0
        %v526 = vsel %vm251, %v230, 0
        %v528 = vsel %vm251, %v231, 0
        %530 = vmatprep.subr.mxu0 %v528
        %531 = vmatpush1.msra.mxu0 %v526
        %532 = vmatprep.subr.mxu0 0.0
        %533 = vmatpush1.msra.mxu0 0.0
        %534 = vmatprep.subr.mxu0 0.0
        %535 = vmatpush1.msra.mxu0 0.0
        %536 = vmatprep.subr.mxu0 0.0
        %537 = vmatpush1.msra.mxu0 0.0
        %538 = vmatprep.subr.mxu0 0.0
        %539 = vmatpush1.msra.mxu0 0.0
        %540 = vmatprep.subr.mxu0 0.0
        %541 = vmatpush1.msra.mxu0 0.0
        %542 = vmatprep.subr.mxu0 0.0
        %543 = vmatpush1.msra.mxu0 0.0
        %544 = vmatprep.subr.mxu0 0.0
        %545 = vmatpush1.msra.mxu0 0.0
        %546 = vmatprep.subr.mxu0 0.0
        %547 = vmatpush1.msra.mxu0 0.0
        %548 = vmatprep.subr.mxu0 0.0
        %549 = vmatpush1.msra.mxu0 0.0
        %550 = vmatprep.subr.mxu0 0.0
        %551 = vmatpush1.msra.mxu0 0.0
        %552 = vmatprep.subr.mxu0 0.0
        %553 = vmatpush1.msra.mxu0 0.0
        %554 = vmatprep.subr.mxu0 0.0
        %555 = vmatpush1.msra.mxu0 0.0
        %556 = vmatprep.subr.mxu0 0.0
        %557 = vmatpush1.msra.mxu0 0.0
        %558 = vmatprep.subr.mxu0 0.0
        %559 = vmatpush1.msra.mxu0 0.0
        %560 = vmatprep.subr.mxu0 0.0
        %561 = vmatpush1.msra.mxu0 0.0
        %562 = vmatprep.subr.mxu0 0.0
        %563 = vmatpush1.msra.mxu0 0.0
        %564 = vmatprep.subr.mxu0 0.0
        %565 = vmatpush1.msra.mxu0 0.0
        %566 = vmatprep.subr.mxu0 0.0
        %567 = vmatpush1.msra.mxu0 0.0
        %568 = vmatprep.subr.mxu0 0.0
        %569 = vmatpush1.msra.mxu0 0.0
        %570 = vmatprep.subr.mxu0 0.0
        %571 = vmatpush1.msra.mxu0 0.0
        %572 = vmatprep.subr.mxu0 0.0
        %573 = vmatpush1.msra.mxu0 0.0
        %574 = vmatprep.subr.mxu0 0.0
        %575 = vmatpush1.msra.mxu0 0.0
        %576 = vmatprep.subr.mxu0 0.0
        %577 = vmatpush1.msra.mxu0 0.0
        %578 = vmatprep.subr.mxu0 0.0
        %579 = vmatpush1.msra.mxu0 0.0
        %580 = vmatprep.subr.mxu0 0.0
        %581 = vmatpush1.msra.mxu0 0.0
        %582 = vmatprep.subr.mxu0 0.0
        %583 = vmatpush1.msra.mxu0 0.0
        %584 = vmatprep.subr.mxu0 0.0
        %585 = vmatpush1.msra.mxu0 0.0
        %586 = vmatprep.subr.mxu0 0.0
        %587 = vmatpush1.msra.mxu0 0.0
        %588 = vmatprep.subr.mxu0 0.0
        %589 = vmatpush1.msra.mxu0 0.0
        %590 = vmatprep.subr.mxu0 0.0
        %591 = vmatpush1.msra.mxu0 0.0
        %592 = vmatprep.subr.mxu0 0.0
        %593 = vmatpush1.msra.mxu0 0.0
        %594 = vmatprep.mubr.f32.mxu0 0.0
        %595 = vmatmul.mubr.f32.gmra.mrb[0].mxu0 %v524
        %v596 = vpop.f32.mrb[0].mxu0
        %v597 = vadd.f32 0.0, %v596
        %v598 = vpop.f32.mrb[0].mxu0
        %v599 = vadd.f32 0.0, %v598
        %600 = vdwg.mxu0
        %601 = vrot.lane.b32.xlu0 %v229, 16
        %v602 = vpop.permute.xlu0 %601
        %603 = vrot.lane.b32.xlu0 %v230, 16
        %v604 = vpop.permute.xlu0 %603
        %605 = vrot.lane.b32.xlu0 %v231, 16
        %v606 = vpop.permute.xlu0 %605
        %vm607 = vcmask 130048
        %v608 = vsel %vm607, %v602, %v604
        %v609 = vsel %vm607, %v604, %v606
        %v611 = vsel %vm247, %v520, 0
        %v613 = vsel %vm251, %v608, 0
        %v615 = vsel %vm251, %v609, 0
        %617 = vmatprep.subr.mxu0 %v615
        %618 = vmatpush1.msra.mxu0 %v613
        %619 = vmatprep.subr.mxu0 0.0
        %620 = vmatpush1.msra.mxu0 0.0
        %621 = vmatprep.subr.mxu0 0.0
        %622 = vmatpush1.msra.mxu0 0.0
        %623 = vmatprep.subr.mxu0 0.0
        %624 = vmatpush1.msra.mxu0 0.0
        %625 = vmatprep.subr.mxu0 0.0
        %626 = vmatpush1.msra.mxu0 0.0
        %627 = vmatprep.subr.mxu0 0.0
        %628 = vmatpush1.msra.mxu0 0.0
        %629 = vmatprep.subr.mxu0 0.0
        %630 = vmatpush1.msra.mxu0 0.0
        %631 = vmatprep.subr.mxu0 0.0
        %632 = vmatpush1.msra.mxu0 0.0
        %633 = vmatprep.subr.mxu0 0.0
        %634 = vmatpush1.msra.mxu0 0.0
        %635 = vmatprep.subr.mxu0 0.0
        %636 = vmatpush1.msra.mxu0 0.0
        %637 = vmatprep.subr.mxu0 0.0
        %638 = vmatpush1.msra.mxu0 0.0
        %639 = vmatprep.subr.mxu0 0.0
        %640 = vmatpush1.msra.mxu0 0.0
        %641 = vmatprep.subr.mxu0 0.0
        %642 = vmatpush1.msra.mxu0 0.0
        %643 = vmatprep.subr.mxu0 0.0
        %644 = vmatpush1.msra.mxu0 0.0
        %645 = vmatprep.subr.mxu0 0.0
        %646 = vmatpush1.msra.mxu0 0.0
        %647 = vmatprep.subr.mxu0 0.0
        %648 = vmatpush1.msra.mxu0 0.0
        %649 = vmatprep.subr.mxu0 0.0
        %650 = vmatpush1.msra.mxu0 0.0
        %651 = vmatprep.subr.mxu0 0.0
        %652 = vmatpush1.msra.mxu0 0.0
        %653 = vmatprep.subr.mxu0 0.0
        %654 = vmatpush1.msra.mxu0 0.0
        %655 = vmatprep.subr.mxu0 0.0
        %656 = vmatpush1.msra.mxu0 0.0
        %657 = vmatprep.subr.mxu0 0.0
        %658 = vmatpush1.msra.mxu0 0.0
        %659 = vmatprep.subr.mxu0 0.0
        %660 = vmatpush1.msra.mxu0 0.0
        %661 = vmatprep.subr.mxu0 0.0
        %662 = vmatpush1.msra.mxu0 0.0
        %663 = vmatprep.subr.mxu0 0.0
        %664 = vmatpush1.msra.mxu0 0.0
        %665 = vmatprep.subr.mxu0 0.0
        %666 = vmatpush1.msra.mxu0 0.0
        %667 = vmatprep.subr.mxu0 0.0
        %668 = vmatpush1.msra.mxu0 0.0
        %669 = vmatprep.subr.mxu0 0.0
        %670 = vmatpush1.msra.mxu0 0.0
        %671 = vmatprep.subr.mxu0 0.0
        %672 = vmatpush1.msra.mxu0 0.0
        %673 = vmatprep.subr.mxu0 0.0
        %674 = vmatpush1.msra.mxu0 0.0
        %675 = vmatprep.subr.mxu0 0.0
        %676 = vmatpush1.msra.mxu0 0.0
        %677 = vmatprep.subr.mxu0 0.0
        %678 = vmatpush1.msra.mxu0 0.0
        %679 = vmatprep.subr.mxu0 0.0
        %680 = vmatpush1.msra.mxu0 0.0
        %681 = vmatprep.mubr.f32.mxu0 0.0
        %682 = vmatmul.mubr.f32.gmra.mrb[0].mxu0 %v611
        %v683 = vpop.f32.mrb[0].mxu0
        %v684 = vadd.f32 %v597, %v683
        %v685 = vpop.f32.mrb[0].mxu0
        %v686 = vadd.f32 %v599, %v685
        %687 = vdwg.mxu0
        %s688 = scalar_lea.vmem %s1, 28
        %v689 = vld [vmem:[%s688] sm:$0xf]
        %690 = vrot.lane.b32.xlu0 %v414, 112
        %v691 = vpop.permute.xlu0 %690
        %692 = vrot.lane.b32.xlu0 %v415, 112
        %v693 = vpop.permute.xlu0 %692
        %694 = vrot.lane.b32.xlu0 %v416, 112
        %v695 = vpop.permute.xlu0 %694
        %vm696 = vcmask 916480
        %v697 = vsel %vm696, %v691, %v693
        %v698 = vsel %vm696, %v693, %v695
        %v700 = vsel %vm247, %v689, 0
        %v702 = vsel %vm251, %v697, 0
        %v704 = vsel %vm251, %v698, 0
        %706 = vmatprep.subr.mxu0 %v704
        %707 = vmatpush1.msra.mxu0 %v702
        %708 = vmatprep.subr.mxu0 0.0
        %709 = vmatpush1.msra.mxu0 0.0
        %710 = vmatprep.subr.mxu0 0.0
        %711 = vmatpush1.msra.mxu0 0.0
        %712 = vmatprep.subr.mxu0 0.0
        %713 = vmatpush1.msra.mxu0 0.0
        %714 = vmatprep.subr.mxu0 0.0
        %715 = vmatpush1.msra.mxu0 0.0
        %716 = vmatprep.subr.mxu0 0.0
        %717 = vmatpush1.msra.mxu0 0.0
        %718 = vmatprep.subr.mxu0 0.0
        %719 = vmatpush1.msra.mxu0 0.0
        %720 = vmatprep.subr.mxu0 0.0
        %721 = vmatpush1.msra.mxu0 0.0
        %722 = vmatprep.subr.mxu0 0.0
        %723 = vmatpush1.msra.mxu0 0.0
        %724 = vmatprep.subr.mxu0 0.0
        %725 = vmatpush1.msra.mxu0 0.0
        %726 = vmatprep.subr.mxu0 0.0
        %727 = vmatpush1.msra.mxu0 0.0
        %728 = vmatprep.subr.mxu0 0.0
        %729 = vmatpush1.msra.mxu0 0.0
        %730 = vmatprep.subr.mxu0 0.0
        %731 = vmatpush1.msra.mxu0 0.0
        %732 = vmatprep.subr.mxu0 0.0
        %733 = vmatpush1.msra.mxu0 0.0
        %734 = vmatprep.subr.mxu0 0.0
        %735 = vmatpush1.msra.mxu0 0.0
        %736 = vmatprep.subr.mxu0 0.0
        %737 = vmatpush1.msra.mxu0 0.0
        %738 = vmatprep.subr.mxu0 0.0
        %739 = vmatpush1.msra.mxu0 0.0
        %740 = vmatprep.subr.mxu0 0.0
        %741 = vmatpush1.msra.mxu0 0.0
        %742 = vmatprep.subr.mxu0 0.0
        %743 = vmatpush1.msra.mxu0 0.0
        %744 = vmatprep.subr.mxu0 0.0
        %745 = vmatpush1.msra.mxu0 0.0
        %746 = vmatprep.subr.mxu0 0.0
        %747 = vmatpush1.msra.mxu0 0.0
        %748 = vmatprep.subr.mxu0 0.0
        %749 = vmatpush1.msra.mxu0 0.0
        %750 = vmatprep.subr.mxu0 0.0
        %751 = vmatpush1.msra.mxu0 0.0
        %752 = vmatprep.subr.mxu0 0.0
        %753 = vmatpush1.msra.mxu0 0.0
        %754 = vmatprep.subr.mxu0 0.0
        %755 = vmatpush1.msra.mxu0 0.0
        %756 = vmatprep.subr.mxu0 0.0
        %757 = vmatpush1.msra.mxu0 0.0
        %758 = vmatprep.subr.mxu0 0.0
        %759 = vmatpush1.msra.mxu0 0.0
        %760 = vmatprep.subr.mxu0 0.0
        %761 = vmatpush1.msra.mxu0 0.0
        %762 = vmatprep.subr.mxu0 0.0
        %763 = vmatpush1.msra.mxu0 0.0
        %764 = vmatprep.subr.mxu0 0.0
        %765 = vmatpush1.msra.mxu0 0.0
        %766 = vmatprep.subr.mxu0 0.0
        %767 = vmatpush1.msra.mxu0 0.0
        %768 = vmatprep.subr.mxu0 0.0
        %769 = vmatpush1.msra.mxu0 0.0
        %770 = vmatprep.mubr.f32.mxu0 0.0
        %771 = vmatmul.mubr.f32.gmra.mrb[0].mxu0 %v700
        %v772 = vpop.f32.mrb[0].mxu0
        %v773 = vadd.f32 0.0, %v772
        %v774 = vpop.f32.mrb[0].mxu0
        %v775 = vadd.f32 0.0, %v774
        %776 = vdwg.mxu0
        %v777 = vadd.f32 %v684, %v773
        %v778 = vadd.f32 %v686, %v775
        %v779 = vadd.f32 %v517, %v777
        %v780 = vadd.f32 %v518, %v778
        %s781 = scalar_lea.vmem %s1, 8
        %v782 = vld [vmem:[%s781] sm:$0xf]
        %s783 = scalar_lea.vmem %s1, 20
        %v784 = vld [vmem:[%s783] sm:$0xf]
        %785 = vrot.lane.b32.xlu0 %v414, 127
        %v786 = vpop.permute.xlu0 %785
        %787 = vrot.lane.b32.xlu0 %v415, 127
        %v788 = vpop.permute.xlu0 %787
        %789 = vrot.lane.b32.xlu0 %v416, 127
        %v790 = vpop.permute.xlu0 %789
        %vm791 = vcmask 1039360
        %v792 = vsel %vm791, %v786, %v788
        %v793 = vsel %vm791, %v788, %v790
        %v795 = vsel %vm247, %v784, 0
        %v797 = vsel %vm251, %v792, 0
        %v799 = vsel %vm251, %v793, 0
        %801 = vmatprep.subr.mxu0 %v799
        %802 = vmatpush1.msra.mxu0 %v797
        %803 = vmatprep.subr.mxu0 0.0
        %804 = vmatpush1.msra.mxu0 0.0
        %805 = vmatprep.subr.mxu0 0.0
        %806 = vmatpush1.msra.mxu0 0.0
        %807 = vmatprep.subr.mxu0 0.0
        %808 = vmatpush1.msra.mxu0 0.0
        %809 = vmatprep.subr.mxu0 0.0
        %810 = vmatpush1.msra.mxu0 0.0
        %811 = vmatprep.subr.mxu0 0.0
        %812 = vmatpush1.msra.mxu0 0.0
        %813 = vmatprep.subr.mxu0 0.0
        %814 = vmatpush1.msra.mxu0 0.0
        %815 = vmatprep.subr.mxu0 0.0
        %816 = vmatpush1.msra.mxu0 0.0
        %817 = vmatprep.subr.mxu0 0.0
        %818 = vmatpush1.msra.mxu0 0.0
        %819 = vmatprep.subr.mxu0 0.0
        %820 = vmatpush1.msra.mxu0 0.0
        %821 = vmatprep.subr.mxu0 0.0
        %822 = vmatpush1.msra.mxu0 0.0
        %823 = vmatprep.subr.mxu0 0.0
        %824 = vmatpush1.msra.mxu0 0.0
        %825 = vmatprep.subr.mxu0 0.0
        %826 = vmatpush1.msra.mxu0 0.0
        %827 = vmatprep.subr.mxu0 0.0
        %828 = vmatpush1.msra.mxu0 0.0
        %829 = vmatprep.subr.mxu0 0.0
        %830 = vmatpush1.msra.mxu0 0.0
        %831 = vmatprep.subr.mxu0 0.0
        %832 = vmatpush1.msra.mxu0 0.0
        %833 = vmatprep.subr.mxu0 0.0
        %834 = vmatpush1.msra.mxu0 0.0
        %835 = vmatprep.subr.mxu0 0.0
        %836 = vmatpush1.msra.mxu0 0.0
        %837 = vmatprep.subr.mxu0 0.0
        %838 = vmatpush1.msra.mxu0 0.0
        %839 = vmatprep.subr.mxu0 0.0
        %840 = vmatpush1.msra.mxu0 0.0
        %841 = vmatprep.subr.mxu0 0.0
        %842 = vmatpush1.msra.mxu0 0.0
        %843 = vmatprep.subr.mxu0 0.0
        %844 = vmatpush1.msra.mxu0 0.0
        %845 = vmatprep.subr.mxu0 0.0
        %846 = vmatpush1.msra.mxu0 0.0
        %847 = vmatprep.subr.mxu0 0.0
        %848 = vmatpush1.msra.mxu0 0.0
        %849 = vmatprep.subr.mxu0 0.0
        %850 = vmatpush1.msra.mxu0 0.0
        %851 = vmatprep.subr.mxu0 0.0
        %852 = vmatpush1.msra.mxu0 0.0
        %853 = vmatprep.subr.mxu0 0.0
        %854 = vmatpush1.msra.mxu0 0.0
        %855 = vmatprep.subr.mxu0 0.0
        %856 = vmatpush1.msra.mxu0 0.0
        %857 = vmatprep.subr.mxu0 0.0
        %858 = vmatpush1.msra.mxu0 0.0
        %859 = vmatprep.subr.mxu0 0.0
        %860 = vmatpush1.msra.mxu0 0.0
        %861 = vmatprep.subr.mxu0 0.0
        %862 = vmatpush1.msra.mxu0 0.0
        %863 = vmatprep.subr.mxu0 0.0
        %864 = vmatpush1.msra.mxu0 0.0
        %865 = vmatprep.mubr.f32.mxu0 0.0
        %866 = vmatmul.mubr.f32.gmra.mrb[0].mxu0 %v795
        %v867 = vpop.f32.mrb[0].mxu0
        %v868 = vadd.f32 0.0, %v867
        %v869 = vpop.f32.mrb[0].mxu0
        %v870 = vadd.f32 0.0, %v869
        %871 = vdwg.mxu0
        %872 = vrot.lane.b32.xlu0 %v229, 15
        %v873 = vpop.permute.xlu0 %872
        %874 = vrot.lane.b32.xlu0 %v230, 15
        %v875 = vpop.permute.xlu0 %874
        %876 = vrot.lane.b32.xlu0 %v231, 15
        %v877 = vpop.permute.xlu0 %876
        %vm878 = vcmask 121856
        %v879 = vsel %vm878, %v873, %v875
        %v880 = vsel %vm878, %v875, %v877
        %v882 = vsel %vm247, %v782, 0
        %v884 = vsel %vm251, %v879, 0
        %v886 = vsel %vm251, %v880, 0
        %888 = vmatprep.subr.mxu0 %v886
        %889 = vmatpush1.msra.mxu0 %v884
        %890 = vmatprep.subr.mxu0 0.0
        %891 = vmatpush1.msra.mxu0 0.0
        %892 = vmatprep.subr.mxu0 0.0
        %893 = vmatpush1.msra.mxu0 0.0
        %894 = vmatprep.subr.mxu0 0.0
        %895 = vmatpush1.msra.mxu0 0.0
        %896 = vmatprep.subr.mxu0 0.0
        %897 = vmatpush1.msra.mxu0 0.0
        %898 = vmatprep.subr.mxu0 0.0
        %899 = vmatpush1.msra.mxu0 0.0
        %900 = vmatprep.subr.mxu0 0.0
        %901 = vmatpush1.msra.mxu0 0.0
        %902 = vmatprep.subr.mxu0 0.0
        %903 = vmatpush1.msra.mxu0 0.0
        %904 = vmatprep.subr.mxu0 0.0
        %905 = vmatpush1.msra.mxu0 0.0
        %906 = vmatprep.subr.mxu0 0.0
        %907 = vmatpush1.msra.mxu0 0.0
        %908 = vmatprep.subr.mxu0 0.0
        %909 = vmatpush1.msra.mxu0 0.0
        %910 = vmatprep.subr.mxu0 0.0
        %911 = vmatpush1.msra.mxu0 0.0
        %912 = vmatprep.subr.mxu0 0.0
        %913 = vmatpush1.msra.mxu0 0.0
        %914 = vmatprep.subr.mxu0 0.0
        %915 = vmatpush1.msra.mxu0 0.0
        %916 = vmatprep.subr.mxu0 0.0
        %917 = vmatpush1.msra.mxu0 0.0
        %918 = vmatprep.subr.mxu0 0.0
        %919 = vmatpush1.msra.mxu0 0.0
        %920 = vmatprep.subr.mxu0 0.0
        %921 = vmatpush1.msra.mxu0 0.0
        %922 = vmatprep.subr.mxu0 0.0
        %923 = vmatpush1.msra.mxu0 0.0
        %924 = vmatprep.subr.mxu0 0.0
        %925 = vmatpush1.msra.mxu0 0.0
        %926 = vmatprep.subr.mxu0 0.0
        %927 = vmatpush1.msra.mxu0 0.0
        %928 = vmatprep.subr.mxu0 0.0
        %929 = vmatpush1.msra.mxu0 0.0
        %930 = vmatprep.subr.mxu0 0.0
        %931 = vmatpush1.msra.mxu0 0.0
        %932 = vmatprep.subr.mxu0 0.0
        %933 = vmatpush1.msra.mxu0 0.0
        %934 = vmatprep.subr.mxu0 0.0
        %935 = vmatpush1.msra.mxu0 0.0
        %936 = vmatprep.subr.mxu0 0.0
        %937 = vmatpush1.msra.mxu0 0.0
        %938 = vmatprep.subr.mxu0 0.0
        %939 = vmatpush1.msra.mxu0 0.0
        %940 = vmatprep.subr.mxu0 0.0
        %941 = vmatpush1.msra.mxu0 0.0
        %942 = vmatprep.subr.mxu0 0.0
        %943 = vmatpush1.msra.mxu0 0.0
        %944 = vmatprep.subr.mxu0 0.0
        %945 = vmatpush1.msra.mxu0 0.0
        %946 = vmatprep.subr.mxu0 0.0
        %947 = vmatpush1.msra.mxu0 0.0
        %948 = vmatprep.subr.mxu0 0.0
        %949 = vmatpush1.msra.mxu0 0.0
        %950 = vmatprep.subr.mxu0 0.0
        %951 = vmatpush1.msra.mxu0 0.0
        %952 = vmatprep.mubr.f32.mxu0 0.0
        %953 = vmatmul.mubr.f32.gmra.mrb[0].mxu0 %v882
        %v954 = vpop.f32.mrb[0].mxu0
        %v955 = vadd.f32 %v868, %v954
        %v956 = vpop.f32.mrb[0].mxu0
        %v957 = vadd.f32 %v870, %v956
        %958 = vdwg.mxu0
        %s959 = scalar_lea.vmem %s1, 32
        %v960 = vld [vmem:[%s959] sm:$0xf]
        %961 = vrot.lane.b32.xlu0 %v414, 111
        %v962 = vpop.permute.xlu0 %961
        %963 = vrot.lane.b32.xlu0 %v415, 111
        %v964 = vpop.permute.xlu0 %963
        %965 = vrot.lane.b32.xlu0 %v416, 111
        %v966 = vpop.permute.xlu0 %965
        %vm967 = vcmask 908288
        %v968 = vsel %vm967, %v962, %v964
        %v969 = vsel %vm967, %v964, %v966
        %v971 = vsel %vm247, %v960, 0
        %v973 = vsel %vm251, %v968, 0
        %v975 = vsel %vm251, %v969, 0
        %977 = vmatprep.subr.mxu0 %v975
        %978 = vmatpush1.msra.mxu0 %v973
        %979 = vmatprep.subr.mxu0 0.0
        %980 = vmatpush1.msra.mxu0 0.0
        %981 = vmatprep.subr.mxu0 0.0
        %982 = vmatpush1.msra.mxu0 0.0
        %983 = vmatprep.subr.mxu0 0.0
        %984 = vmatpush1.msra.mxu0 0.0
        %985 = vmatprep.subr.mxu0 0.0
        %986 = vmatpush1.msra.mxu0 0.0
        %987 = vmatprep.subr.mxu0 0.0
        %988 = vmatpush1.msra.mxu0 0.0
        %989 = vmatprep.subr.mxu0 0.0
        %990 = vmatpush1.msra.mxu0 0.0
        %991 = vmatprep.subr.mxu0 0.0
        %992 = vmatpush1.msra.mxu0 0.0
        %993 = vmatprep.subr.mxu0 0.0
        %994 = vmatpush1.msra.mxu0 0.0
        %995 = vmatprep.subr.mxu0 0.0
        %996 = vmatpush1.msra.mxu0 0.0
        %997 = vmatprep.subr.mxu0 0.0
        %998 = vmatpush1.msra.mxu0 0.0
        %999 = vmatprep.subr.mxu0 0.0
        %1000 = vmatpush1.msra.mxu0 0.0
        %1001 = vmatprep.subr.mxu0 0.0
        %1002 = vmatpush1.msra.mxu0 0.0
        %1003 = vmatprep.subr.mxu0 0.0
        %1004 = vmatpush1.msra.mxu0 0.0
        %1005 = vmatprep.subr.mxu0 0.0
        %1006 = vmatpush1.msra.mxu0 0.0
        %1007 = vmatprep.subr.mxu0 0.0
        %1008 = vmatpush1.msra.mxu0 0.0
        %1009 = vmatprep.subr.mxu0 0.0
        %1010 = vmatpush1.msra.mxu0 0.0
        %1011 = vmatprep.subr.mxu0 0.0
        %1012 = vmatpush1.msra.mxu0 0.0
        %1013 = vmatprep.subr.mxu0 0.0
        %1014 = vmatpush1.msra.mxu0 0.0
        %1015 = vmatprep.subr.mxu0 0.0
        %1016 = vmatpush1.msra.mxu0 0.0
        %1017 = vmatprep.subr.mxu0 0.0
        %1018 = vmatpush1.msra.mxu0 0.0
        %1019 = vmatprep.subr.mxu0 0.0
        %1020 = vmatpush1.msra.mxu0 0.0
        %1021 = vmatprep.subr.mxu0 0.0
        %1022 = vmatpush1.msra.mxu0 0.0
        %1023 = vmatprep.subr.mxu0 0.0
        %1024 = vmatpush1.msra.mxu0 0.0
        %1025 = vmatprep.subr.mxu0 0.0
        %1026 = vmatpush1.msra.mxu0 0.0
        %1027 = vmatprep.subr.mxu0 0.0
        %1028 = vmatpush1.msra.mxu0 0.0
        %1029 = vmatprep.subr.mxu0 0.0
        %1030 = vmatpush1.msra.mxu0 0.0
        %1031 = vmatprep.subr.mxu0 0.0
        %1032 = vmatpush1.msra.mxu0 0.0
        %1033 = vmatprep.subr.mxu0 0.0
        %1034 = vmatpush1.msra.mxu0 0.0
        %1035 = vmatprep.subr.mxu0 0.0
        %1036 = vmatpush1.msra.mxu0 0.0
        %1037 = vmatprep.subr.mxu0 0.0
        %1038 = vmatpush1.msra.mxu0 0.0
        %1039 = vmatprep.subr.mxu0 0.0
        %1040 = vmatpush1.msra.mxu0 0.0
        %1041 = vmatprep.mubr.f32.mxu0 0.0
        %1042 = vmatmul.mubr.f32.gmra.mrb[0].mxu0 %v971
        %v1043 = vpop.f32.mrb[0].mxu0
        %v1044 = vadd.f32 0.0, %v1043
        %v1045 = vpop.f32.mrb[0].mxu0
        %v1046 = vadd.f32 0.0, %v1045
        %1047 = vdwg.mxu0
        %v1048 = vadd.f32 %v955, %v1044
        %v1049 = vadd.f32 %v957, %v1046
        %v1050 = vsel %vm227, 1, 0
        %v1051 = vsel %vm228, 1, 0
        %vm1052 = vcmp.eq.s32.totalorder %v1050, 1
        %vm1053 = vcmp.eq.s32.totalorder %v1051, 1
        %v1054 = vsel %vm1052, %v1048, 0.0
        %v1055 = vsel %vm1053, %v1049, 0.0
        %v1056 = vadd.f32 %v779, %v1054
        %v1057 = vadd.f32 %v780, %v1055
        %v1060 = vcombine.low %v1056, %v1057
        %1062 = vst [vmem:[%s150] sm:$0xff] %v1060
        %s1063 = sand.u32 %s85, 1
        %s1064 = scalar_lea.sflag [#allocation4], %s1063
        %s1065 = sand.u32 %s85, 1
        %s1066 = smul.addr %s1065, 8
        %s1067 = scalar_lea.vmem [#allocation3], %s1066
        // Predicated region
        $region45: #{tpu_custom_call.1} parent=27 // pred_check
          %p1068 = pneg %p95
        $region46: #{tpu_custom_call.1} parent=27 // pred_check_branch
          %1070 = sbr.rel (%p1068) target = $region48
        $region47: #{tpu_custom_call.1} parent=27 // pred_region
          %s1071 = smul.u32 2, %s21
          %s1073 = ssub.s32 128, 128
          %1074 = vsyncadd %s1064, %s1073
          %s1075 = smul.addr %s20, 2
          %s1076 = sadd.s32 %s1071, %s1075
          %s1077 = smul.addr %s1076, 64
          %s1078 = scalar_lea.hbm %s2, %s1077
          %s1080 = sshll.u32 %s1067, 4
          %s1081 = int_to_ptr.vmem [resolvable:$true] %s1080
          %1083 = dma.vmem_to_hbm [thread:$0]  %s1081, 128, %s1078, %s1064
        $region48: #{tpu_custom_call.1} parent=27 // pred_fallthru
          _
      $region28: #{tpu_custom_call.1} parent=5 // pred_fallthru
        _
      %p1084 = scmp.le.s32.totalorder 2, %s11
      // Predicated region
      $region49: #{tpu_custom_call.1} parent=5 // pred_check
        %p1085 = pneg %p1084
      $region50: #{tpu_custom_call.1} parent=5 // pred_check_branch
        %1087 = sbr.rel (%p1085) target = $region52
      $region51: #{tpu_custom_call.1} parent=5 // pred_region
        %s1088 = ssub.s32 %s11, 2
        // Predicated region
        $region53: #{tpu_custom_call.1} parent=51 // pred_check
          %p1089 = pneg %p101
        $region54: #{tpu_custom_call.1} parent=51 // pred_check_branch
          %1091 = sbr.rel (%p1089) target = $region56
        $region55: #{tpu_custom_call.1} parent=51 // pred_region
          %s1092 = sand.u32 %s86, 1
          %s1093 = scalar_lea.sflag [#allocation4], %s1092
          %s1094 = sand.u32 %s86, 1
          %s1095 = smul.addr %s1094, 8
          %s1096 = scalar_lea.vmem [#allocation3], %s1095
          %1097 = dma.done %s1093, 128
        $region56: #{tpu_custom_call.1} parent=51 // pred_fallthru
          _
      $region52: #{tpu_custom_call.1} parent=5 // pred_fallthru
        _
    $region6: #{tpu_custom_call.1} parent=1 // loop_footer
      %s15 = sadd.s32 1, %s11
    $region7: #{tpu_custom_call.1} parent=1 // loop_footer_branch
      %10 = sbr.rel target = $region3
    $region8: #{tpu_custom_call.1} parent=1 // loop_exit
      _
    %1098 = vsyncpa [#allocation4], 1
    %s1099 = scalar_lea.sflag [#allocation4], 1
    %1100 = vsyncpa %s1099, 1

</llo_original>
